<compile_context>
chip_gen: v7x
topology: tpu7x:2x2x1
jax: 0.10.0
libtpu: 0.0.40
codegen_flags: <defaults>
</compile_context>

<pallas_src>
import jax
import jax.numpy as jnp
from jax.experimental import pallas as pl
from jax.experimental.pallas import tpu as pltpu

_LANE = 128
_SUBLANE = 8
_F32_BYTES = 4


def _round_up(a, b):
    return ((a + b - 1) // b) * b


def _vmem_capacity_bytes():
    try:
        return int(pltpu.get_tpu_info().vmem_capacity_bytes)
    except Exception:
        return 64 * 1024 * 1024        # conservative fallback (v7x per-core VMEM)


# ---------------------------------------------------------------------------
# Pallas kernels (elementwise; blend + elastic parameter conversion).
# ---------------------------------------------------------------------------
def _fwi_param_kernel_masked(ip_ref, is_ref, den_ref, mask_ref,
                             ip_fr_ref, is_fr_ref, den_fr_ref,
                             lam_out, mu_out, den_out):
    m = mask_ref[...]
    # Frozen refs were pre-multiplied by (1 - Mask) at __init__ -> single FMA.
    ip = m * ip_ref[...] + ip_fr_ref[...]
    s = m * is_ref[...] + is_fr_ref[...]
    d = m * den_ref[...] + den_fr_ref[...]
    ip2 = ip * ip
    s2 = s * s
    inv = 1.0 / d                      # one divide shared by Lambda and Mu
    lam_out[...] = (ip2 - 2.0 * s2) * inv
    mu_out[...] = s2 * inv
    den_out[...] = d


def _fwi_param_kernel_plain(ip_ref, is_ref, den_ref, lam_out, mu_out, den_out):
    ip = ip_ref[...]
    s = is_ref[...]
    d = den_ref[...]
    ip2 = ip * ip
    s2 = s * s
    inv = 1.0 / d
    lam_out[...] = (ip2 - 2.0 * s2) * inv
    mu_out[...] = s2 * inv
    den_out[...] = d


# ---------------------------------------------------------------------------
# Tiling plan (computed once at __init__).
# ---------------------------------------------------------------------------
def _plan_tiles(nz_pad, nx_pad, n_streams):
    """Returns (nz_al, nx_al, block_rows, n_steps)."""
    nx_al = _round_up(nx_pad, _LANE)
    nz_ceil = _round_up(nz_pad, _SUBLANE)
    bytes_per_row = nx_al * _F32_BYTES
    n_live = 2 * n_streams                       # double-buffered by the pipeline

    vmem_cap = _vmem_capacity_bytes()
    buf_budget = int(vmem_cap * 0.4)             # <= ~40% of VMEM for live buffers
    rows_budget = max(_SUBLANE, buf_budget // (n_live * bytes_per_row))
    rows_target = max(_SUBLANE, (1 << 20) // bytes_per_row)   # ~1 MiB per buffer
    block_rows = max(_SUBLANE, (min(rows_budget, rows_target) // _SUBLANE) * _SUBLANE)
    block_rows = min(block_rows, nz_ceil)

    # Enough grid steps for the v7x 2-TensorCore 'parallel' split plus
    # double-buffering, as long as every step still holds >= one sublane tile.
    n_steps = pl.cdiv(nz_pad, block_rows)
    min_steps = max(1, min(4, nz_ceil // _SUBLANE))
    n_steps = max(n_steps, min_steps)

    # Even the rows out across steps so the last block is not mostly padding.
    block_rows = _round_up(pl.cdiv(nz_pad, n_steps), _SUBLANE)
    n_steps = pl.cdiv(nz_pad, block_rows)
    nz_al = n_steps * block_rows
    return nz_al, nx_al, block_rows, n_steps


def _vmem_limit(tile_bytes, n_streams, vmem_cap):
    want = 2 * n_streams * tile_bytes + (16 << 20)
    return int(min(max(32 << 20, want), int(vmem_cap * 0.75), 128 << 20))


# ---------------------------------------------------------------------------
# pallas_call wrapper: all operands must already be (nz_al, nx_al) float32.
# ---------------------------------------------------------------------------
def fwi_params_pallas(ip_al, is_al, den_al,
                      mask_al=None, ip_fr_al=None, is_fr_al=None, den_fr_al=None,
                      *, block_rows, n_steps):
    nz_al, nx_al = ip_al.shape
    masked = mask_al is not None
    if masked:
        operands = (ip_al, is_al, den_al, mask_al, ip_fr_al, is_fr_al, den_fr_al)
        kernel = _fwi_param_kernel_masked
    else:
        operands = (ip_al, is_al, den_al)
        kernel = _fwi_param_kernel_plain
    n_in = len(operands)
    n_streams = n_in + 3

    spec = pl.BlockSpec((block_rows, nx_al), lambda i: (i, 0))
    out_sds = jax.ShapeDtypeStruct((nz_al, nx_al), jnp.float32)
    tile_bytes = block_rows * nx_al * _F32_BYTES

    return pl.pallas_call(
        kernel,
        grid=(n_steps,),
        in_specs=[spec] * n_in,
        out_specs=(spec, spec, spec),
        out_shape=(out_sds, out_sds, out_sds),
        compiler_params=pltpu.CompilerParams(
            dimension_semantics=("parallel",),
            vmem_limit_bytes=_vmem_limit(tile_bytes, n_streams,
                                         _vmem_capacity_bytes()),
            allow_input_fusion=[True] * n_in,
        ),
    )(*operands)


# ---------------------------------------------------------------------------
# Glue: replicate ("edge") padding, mirroring ft.padding of the original code:
#   F.pad(x, (nPml, nPml, nPml, nPml + nPad), mode='replicate')
# ---------------------------------------------------------------------------
def padding(IP, IS, Den, nz_orig, nx_orig, nz, nx, nPml, nPad):
    assert nz == nz_orig and nx == nx_orig, "resampling branch not exercised"

    def _pad(x):
        return jnp.pad(x.astype(jnp.float32),
                       ((nPml, nPml + nPad), (nPml, nPml)), mode='edge')

    return _pad(IP), _pad(IS), _pad(Den)


# ---------------------------------------------------------------------------
# JAX re-implementation of the module (forward only).
# ---------------------------------------------------------------------------
class FWI_IP_IS_Den:
    def __init__(self, IP, IS, Den, Stf, opt, Mask=None, crop_outputs=True):
        self.nz = opt['nz']
        self.nx = opt['nx']
        self.nz_orig = opt['nz_orig']
        self.nx_orig = opt['nx_orig']
        self.nPml = opt['nPml']
        self.nPad = opt['nPad']
        assert self.nz == self.nz_orig and self.nx == self.nx_orig

        self.nz_pad = self.nz + 2 * self.nPml + self.nPad
        self.nx_pad = self.nx + 2 * self.nPml

        # --- Mask==None / all-ones fast path: skip the blend (3 input streams).
        use_mask = Mask is not None
        if use_mask:
            try:
                if bool(jnp.all(Mask == 1.0)):
                    use_mask = False
            except Exception:
                pass                               # traced mask -> keep blend path
        self.use_mask = use_mask

        n_streams = 10 if use_mask else 6
        (self.nz_al, self.nx_al,
         self.block_rows, self.n_steps) = _plan_tiles(self.nz_pad, self.nx_pad,
                                                      n_streams)
        self._extra_z = self.nz_al - self.nz_pad
        self._extra_x = self.nx_al - self.nx_pad

        # --- frozen reference models: single replicate pad straight to the
        #     lane/sublane-aligned shape, computed ONCE here.
        IP_ref_al = self._pad_to_aligned(IP)
        IS_ref_al = self._pad_to_aligned(IS)
        Den_ref_al = self._pad_to_aligned(Den)
        self.IP_ref = IP_ref_al[:self.nz_pad, :self.nx_pad]
        self.IS_ref = IS_ref_al[:self.nz_pad, :self.nx_pad]
        self.Den_ref = Den_ref_al[:self.nz_pad, :self.nx_pad]

        if Mask is None:
            self.Mask = jnp.ones((self.nz_pad, self.nx_pad), jnp.float32)
        else:
            self.Mask = Mask.astype(jnp.float32)

        if use_mask:
            # Pre-aligned constant streams (never re-padded per forward):
            # Mask and the frozen (1 - Mask) * ref products.
            mask_al = jnp.pad(self.Mask,
                              ((0, self._extra_z), (0, self._extra_x)),
                              mode='edge')
            omm = 1.0 - mask_al
            self.Mask_al = mask_al
            self.IP_ref_masked_al = omm * IP_ref_al
            self.IS_ref_masked_al = omm * IS_ref_al
            self.Den_ref_masked_al = omm * Den_ref_al
        else:
            self.Mask_al = None
            self.IP_ref_masked_al = None
            self.IS_ref_masked_al = None
            self.Den_ref_masked_al = None

        # "parameters"
        self.IP = IP
        self.IS = IS
        self.Den = Den

        self.Stf = Stf
        self.para_fname = opt.get('para_fname')
        self.crop_outputs = crop_outputs

    def _pad_to_aligned(self, x):
        # Replicate (PML) pad + alignment pad collapsed into ONE jnp.pad.
        # 'edge' mode keeps Den strictly positive in the slack region.
        return jnp.pad(x.astype(jnp.float32),
                       ((self.nPml, self.nPml + self.nPad + self._extra_z),
                        (self.nPml, self.nPml + self._extra_x)),
                       mode='edge')

    def forward(self, Shot_ids, ngpu=1):
        IP_al = self._pad_to_aligned(self.IP)
        IS_al = self._pad_to_aligned(self.IS)
        Den_al = self._pad_to_aligned(self.Den)

        if self.use_mask:
            lam, mu, den = fwi_params_pallas(
                IP_al, IS_al, Den_al,
                self.Mask_al, self.IP_ref_masked_al,
                self.IS_ref_masked_al, self.Den_ref_masked_al,
                block_rows=self.block_rows, n_steps=self.n_steps)
        else:
            lam, mu, den = fwi_params_pallas(
                IP_al, IS_al, Den_al,
                block_rows=self.block_rows, n_steps=self.n_steps)

        # Crop only when the aligned shape differs (choose nPml so nx_pad is a
        # multiple of 128 and this is a no-op -> no relayout copies).
        if self.crop_outputs and (self._extra_z or self._extra_x):
            lam = lam[:self.nz_pad, :self.nx_pad]
            mu = mu[:self.nz_pad, :self.nx_pad]
            den = den[:self.nz_pad, :self.nx_pad]

        # TODO(synk): FWIFunction / fwi_ops.backward is a custom CUDA elastic
        # FDTD wave-propagation solver (libCUFD.cu, el_stress.cu, ...); it has
        # no Pallas equivalent, so the prepared (Lambda, Mu, Den) elastic
        # fields are returned instead of the misfit.
        return lam, mu, den


# ---------------------------------------------------------------------------
# Demo / self-check
# ---------------------------------------------------------------------------
def _reference(IP, IS, Den, IP_ref, IS_ref, Den_ref, Mask, nPml, nPad):
    IP_pad = jnp.pad(IP, ((nPml, nPml + nPad), (nPml, nPml)), mode='edge')
    IS_pad = jnp.pad(IS, ((nPml, nPml + nPad), (nPml, nPml)), mode='edge')
    Den_pad = jnp.pad(Den, ((nPml, nPml + nPad), (nPml, nPml)), mode='edge')
    ip_m = Mask * IP_pad + (1.0 - Mask) * IP_ref
    is_m = Mask * IS_pad + (1.0 - Mask) * IS_ref
    den_m = Mask * Den_pad + (1.0 - Mask) * Den_ref
    lam = (ip_m ** 2 - 2.0 * is_m ** 2) / den_m
    mu = is_m ** 2 / den_m
    return lam, mu, den_m


if __name__ == "__main__":
    key = jax.random.PRNGKey(0)

    def run_case(nz, nx, nPml, nPad, with_mask, k):
        nz_pad = nz + 2 * nPml + nPad
        nx_pad = nx + 2 * nPml
        k_ip, k_is, k_den, k_stf = jax.random.split(k, 4)
        IP0 = 3000.0 + 200.0 * jax.random.normal(k_ip, (nz, nx), jnp.float32)
        IS0 = 1500.0 + 100.0 * jax.random.normal(k_is, (nz, nx), jnp.float32)
        Den0 = 2000.0 + 50.0 * jax.random.normal(k_den, (nz, nx), jnp.float32)
        Stf = jax.random.normal(k_stf, (2, 8), jnp.float32)

        if with_mask:
            Mask = jnp.ones((nz_pad, nx_pad), jnp.float32).at[:4, :].set(0.0)
        else:
            Mask = None

        opt = dict(nz=nz, nx=nx, nz_orig=nz, nx_orig=nx,
                   nPml=nPml, nPad=nPad, para_fname="synthetic.json")
        model = FWI_IP_IS_Den(IP0, IS0, Den0, Stf, opt, Mask=Mask)

        # Simulate an optimizer update so the blend path is non-trivial.
        model.IP = IP0 * 1.05
        model.IS = IS0 * 0.95
        model.Den = Den0 * 1.02

        Shot_ids = jnp.array([0, 1], dtype=jnp.int32)
        Lambda, Mu, Den_m = model.forward(Shot_ids)
        jax.block_until_ready((Lambda, Mu, Den_m))

        mask_full = model.Mask
        lam_ref, mu_ref, den_ref = _reference(
            model.IP, model.IS, model.Den,
            model.IP_ref, model.IS_ref, model.Den_ref,
            mask_full, nPml, nPad)

        assert Lambda.shape == (nz_pad, nx_pad)
        assert jnp.allclose(Lambda, lam_ref, rtol=1e-5, atol=1e-2)
        assert jnp.allclose(Mu, mu_ref, rtol=1e-5, atol=1e-2)
        assert jnp.allclose(Den_m, den_ref, rtol=1e-5, atol=1e-2)

    k1, k2 = jax.random.split(key)
    # Case A: non-trivial mask, lane dim NOT 128-aligned (crop path exercised).
    run_case(nz=16, nx=16, nPml=8, nPad=0, with_mask=True, k=k1)
    # Case B: Mask=None fast path, nx_pad == 128 (lane-aligned, zero-crop path).
    run_case(nz=16, nx=112, nPml=8, nPad=0, with_mask=False, k=k2)

    print("KERNEL_OK")
</pallas_src>

<mosaic_0001>
module attributes {stable_mosaic.version = 11 : i64} {
  func.func @_fwi_param_kernel_masked(%arg0: i32, %arg1: memref<8x128xf32, #tpu.memory_space<vmem>>, %arg2: memref<8x128xf32, #tpu.memory_space<vmem>>, %arg3: memref<8x128xf32, #tpu.memory_space<vmem>>, %arg4: memref<8x128xf32, #tpu.memory_space<vmem>>, %arg5: memref<8x128xf32, #tpu.memory_space<vmem>>, %arg6: memref<8x128xf32, #tpu.memory_space<vmem>>, %arg7: memref<8x128xf32, #tpu.memory_space<vmem>>, %arg8: memref<8x128xf32, #tpu.memory_space<vmem>>, %arg9: memref<8x128xf32, #tpu.memory_space<vmem>>, %arg10: memref<8x128xf32, #tpu.memory_space<vmem>>) attributes {dimension_semantics = [#tpu.dimension_semantics<parallel>], iteration_bounds = array<i64: 4>, scalar_prefetch = 0 : i64, scratch_operands = 0 : i64, tpu.core_type = #tpu.core_type<tc>, window_params = [{transform_indices = @transform_0, window_bounds = array<i64: 8, 128>}, {transform_indices = @transform_1, window_bounds = array<i64: 8, 128>}, {transform_indices = @transform_2, window_bounds = array<i64: 8, 128>}, {transform_indices = @transform_3, window_bounds = array<i64: 8, 128>}, {transform_indices = @transform_4, window_bounds = array<i64: 8, 128>}, {transform_indices = @transform_5, window_bounds = array<i64: 8, 128>}, {transform_indices = @transform_6, window_bounds = array<i64: 8, 128>}, {transform_indices = @transform_7, window_bounds = array<i64: 8, 128>}, {transform_indices = @transform_8, window_bounds = array<i64: 8, 128>}, {transform_indices = @transform_9, window_bounds = array<i64: 8, 128>}]} {
    %c0 = arith.constant 0 : index
    %c0_0 = arith.constant 0 : index
    %0 = vector.load %arg4[%c0, %c0_0] : memref<8x128xf32, #tpu.memory_space<vmem>>, vector<8x128xf32>
    %c0_1 = arith.constant 0 : index
    %c0_2 = arith.constant 0 : index
    %1 = vector.load %arg1[%c0_1, %c0_2] : memref<8x128xf32, #tpu.memory_space<vmem>>, vector<8x128xf32>
    %2 = arith.mulf %0, %1 : vector<8x128xf32>
    %c0_3 = arith.constant 0 : index
    %c0_4 = arith.constant 0 : index
    %3 = vector.load %arg5[%c0_3, %c0_4] : memref<8x128xf32, #tpu.memory_space<vmem>>, vector<8x128xf32>
    %4 = arith.addf %2, %3 : vector<8x128xf32>
    %c0_5 = arith.constant 0 : index
    %c0_6 = arith.constant 0 : index
    %5 = vector.load %arg2[%c0_5, %c0_6] : memref<8x128xf32, #tpu.memory_space<vmem>>, vector<8x128xf32>
    %6 = arith.mulf %0, %5 : vector<8x128xf32>
    %c0_7 = arith.constant 0 : index
    %c0_8 = arith.constant 0 : index
    %7 = vector.load %arg6[%c0_7, %c0_8] : memref<8x128xf32, #tpu.memory_space<vmem>>, vector<8x128xf32>
    %8 = arith.addf %6, %7 : vector<8x128xf32>
    %c0_9 = arith.constant 0 : index
    %c0_10 = arith.constant 0 : index
    %9 = vector.load %arg3[%c0_9, %c0_10] : memref<8x128xf32, #tpu.memory_space<vmem>>, vector<8x128xf32>
    %10 = arith.mulf %0, %9 : vector<8x128xf32>
    %c0_11 = arith.constant 0 : index
    %c0_12 = arith.constant 0 : index
    %11 = vector.load %arg7[%c0_11, %c0_12] : memref<8x128xf32, #tpu.memory_space<vmem>>, vector<8x128xf32>
    %12 = arith.addf %10, %11 : vector<8x128xf32>
    %13 = arith.mulf %4, %4 : vector<8x128xf32>
    %14 = arith.mulf %8, %8 : vector<8x128xf32>
    %cst = arith.constant 1.000000e+00 : f32
    %15 = vector.broadcast %cst : f32 to vector<8x128xf32>
    %16 = arith.divf %15, %12 : vector<8x128xf32>
    %cst_13 = arith.constant 2.000000e+00 : f32
    %17 = vector.broadcast %cst_13 : f32 to vector<8x128xf32>
    %18 = arith.mulf %17, %14 : vector<8x128xf32>
    %19 = arith.subf %13, %18 : vector<8x128xf32>
    %20 = arith.mulf %19, %16 : vector<8x128xf32>
    %c0_14 = arith.constant 0 : index
    %c0_15 = arith.constant 0 : index
    %21 = vector.load %arg8[%c0_14, %c0_15] : memref<8x128xf32, #tpu.memory_space<vmem>>, vector<8x128xf32>
    tpu.vector_store %arg8[%c0_14, %c0_15], %20 {strides = array<i32>} : memref<8x128xf32, #tpu.memory_space<vmem>>, vector<8x128xf32>,
    %22 = arith.mulf %14, %16 : vector<8x128xf32>
    %c0_16 = arith.constant 0 : index
    %c0_17 = arith.constant 0 : index
    %23 = vector.load %arg9[%c0_16, %c0_17] : memref<8x128xf32, #tpu.memory_space<vmem>>, vector<8x128xf32>
    tpu.vector_store %arg9[%c0_16, %c0_17], %22 {strides = array<i32>} : memref<8x128xf32, #tpu.memory_space<vmem>>, vector<8x128xf32>,
    %c0_18 = arith.constant 0 : index
    %c0_19 = arith.constant 0 : index
    %24 = vector.load %arg10[%c0_18, %c0_19] : memref<8x128xf32, #tpu.memory_space<vmem>>, vector<8x128xf32>
    tpu.vector_store %arg10[%c0_18, %c0_19], %12 {strides = array<i32>} : memref<8x128xf32, #tpu.memory_space<vmem>>, vector<8x128xf32>,
    return
  }
  func.func @transform_0(%arg0: i32) -> (i32, i32) {
    %c0_i32 = arith.constant 0 : i32
    %c0_i32_0 = arith.constant 0 : i32
    return %arg0, %c0_i32 : i32, i32
  }
  func.func @transform_1(%arg0: i32) -> (i32, i32) {
    %c0_i32 = arith.constant 0 : i32
    %c0_i32_0 = arith.constant 0 : i32
    return %arg0, %c0_i32 : i32, i32
  }
  func.func @transform_2(%arg0: i32) -> (i32, i32) {
    %c0_i32 = arith.constant 0 : i32
    %c0_i32_0 = arith.constant 0 : i32
    return %arg0, %c0_i32 : i32, i32
  }
  func.func @transform_3(%arg0: i32) -> (i32, i32) {
    %c0_i32 = arith.constant 0 : i32
    %c0_i32_0 = arith.constant 0 : i32
    return %arg0, %c0_i32 : i32, i32
  }
  func.func @transform_4(%arg0: i32) -> (i32, i32) {
    %c0_i32 = arith.constant 0 : i32
    %c0_i32_0 = arith.constant 0 : i32
    return %arg0, %c0_i32 : i32, i32
  }
  func.func @transform_5(%arg0: i32) -> (i32, i32) {
    %c0_i32 = arith.constant 0 : i32
    %c0_i32_0 = arith.constant 0 : i32
    return %arg0, %c0_i32 : i32, i32
  }
  func.func @transform_6(%arg0: i32) -> (i32, i32) {
    %c0_i32 = arith.constant 0 : i32
    %c0_i32_0 = arith.constant 0 : i32
    return %arg0, %c0_i32 : i32, i32
  }
  func.func @transform_7(%arg0: i32) -> (i32, i32) {
    %c0_i32 = arith.constant 0 : i32
    %c0_i32_0 = arith.constant 0 : i32
    return %arg0, %c0_i32 : i32, i32
  }
  func.func @transform_8(%arg0: i32) -> (i32, i32) {
    %c0_i32 = arith.constant 0 : i32
    %c0_i32_0 = arith.constant 0 : i32
    return %arg0, %c0_i32 : i32, i32
  }
  func.func @transform_9(%arg0: i32) -> (i32, i32) {
    %c0_i32 = arith.constant 0 : i32
    %c0_i32_0 = arith.constant 0 : i32
    return %arg0, %c0_i32 : i32, i32
  }
}

</mosaic_0001>

<llo_original>
// kernel: tpu_custom_call.1
$region0: #{tpu_custom_call.1}
  #allocation0 [shape = 'u32[]', space=smem, size = 0x4, offset = 0x4, fixed_abs, tag = 'smem constant byte address 0x4 - core index']
  #allocation1 [shape = 'u32[144,128]{1,0:T(1,128)}', space=vmem, size = 0x12000, scoped, tag = 'internal scratch']
  %s0 = inlined_call_operand.hbm [shape: f32[32,128], index: 0, kind: input, shape index: {}]
  %s1 = inlined_call_operand.hbm [shape: f32[32,128], index: 1, kind: input, shape index: {}]
  %s2 = inlined_call_operand.hbm [shape: f32[32,128], index: 2, kind: input, shape index: {}]
  %s3 = inlined_call_operand.hbm [shape: f32[32,128], index: 3, kind: input, shape index: {}]
  %s4 = inlined_call_operand.hbm [shape: f32[32,128], index: 4, kind: input, shape index: {}]
  %s5 = inlined_call_operand.hbm [shape: f32[32,128], index: 5, kind: input, shape index: {}]
  %s6 = inlined_call_operand.hbm [shape: f32[32,128], index: 6, kind: input, shape index: {}]
  %s7 = inlined_call_operand.hbm [shape: f32[32,128], index: 7, kind: output, shape index: {0}]
  %s8 = inlined_call_operand.hbm [shape: f32[32,128], index: 8, kind: output, shape index: {1}]
  %s9 = inlined_call_operand.hbm [shape: f32[32,128], index: 9, kind: output, shape index: {2}]
  %10 = xla_tuple %s7, %s8, %s9
  %s11 = sld [smem:[#allocation0]]
  $region105: #{tpu_custom_call.1} parent=0
    _
  %s13 = ssub.s32 1, %s11
  %s14 = scalar_select 0, %s13, %s11
  $region1: #{tpu_custom_call.1} parent=0
    #allocation2 [shape = 'u8[8192]{0}', space=vmem, size = 0x2000, scoped, tag = 'input window, operand 0']
    #allocation3 [shape = 's32[2]{0}', space=sflag, size = 0x8, scoped, tag = 'scoped memory for tpu_custom_call.1']
    #allocation4 [shape = 's32[2]{0}', space=sflag, size = 0x8, scoped, tag = 'scoped memory for tpu_custom_call.1']
    #allocation5 [shape = 'u8[8192]{0}', space=vmem, size = 0x2000, scoped, tag = 'input window, operand 1']
    #allocation6 [shape = 's32[2]{0}', space=sflag, size = 0x8, scoped, tag = 'scoped memory for tpu_custom_call.1']
    #allocation7 [shape = 'u8[8192]{0}', space=vmem, size = 0x2000, scoped, tag = 'input window, operand 2']
    #allocation8 [shape = 'u8[8192]{0}', space=vmem, size = 0x2000, scoped, tag = 'input window, operand 3']
    #allocation9 [shape = 's32[2]{0}', space=sflag, size = 0x8, scoped, tag = 'scoped memory for tpu_custom_call.1']
    #allocation10 [shape = 'u8[8192]{0}', space=vmem, size = 0x2000, scoped, tag = 'input window, operand 4']
    #allocation11 [shape = 'u8[8192]{0}', space=vmem, size = 0x2000, scoped, tag = 'input window, operand 5']
    #allocation12 [shape = 's32[2]{0}', space=sflag, size = 0x8, scoped, tag = 'scoped memory for tpu_custom_call.1']
    #allocation13 [shape = 'u8[8192]{0}', space=vmem, size = 0x2000, scoped, tag = 'input window, operand 6']
    #allocation14 [shape = 'u8[8192]{0}', space=vmem, size = 0x2000, scoped, tag = 'output window, operand 0']
    #allocation15 [shape = 'u8[8192]{0}', space=vmem, size = 0x2000, scoped, tag = 'output window, operand 1']
    #allocation16 [shape = 's32[2]{0}', space=sflag, size = 0x8, scoped, tag = 'scoped memory for tpu_custom_call.1']
    #allocation17 [shape = 'u8[8192]{0}', space=vmem, size = 0x2000, scoped, tag = 'output window, operand 2']
    %15 = vsyncpa [#allocation3], 0
    %s16 = scalar_lea.sflag [#allocation3], 1
    %17 = vsyncpa %s16, 0
    %18 = vsyncpa [#allocation6], 0
    %s19 = scalar_lea.sflag [#allocation6], 1
    %20 = vsyncpa %s19, 0
    %21 = vsyncpa [#allocation9], 0
    %s22 = scalar_lea.sflag [#allocation9], 1
    %23 = vsyncpa %s22, 0
    %24 = vsyncpa [#allocation12], 0
    %s25 = scalar_lea.sflag [#allocation12], 1
    %26 = vsyncpa %s25, 0
    %27 = vsyncpa [#allocation4], 0
    %s28 = scalar_lea.sflag [#allocation4], 1
    %29 = vsyncpa %s28, 0
    %30 = vsyncpa [#allocation16], 0
    %s31 = scalar_lea.sflag [#allocation16], 1
    %32 = vsyncpa %s31, 0
    loop: start=0, step=1, limit=6
    $region2: #{tpu_custom_call.1} parent=1 // loop_pre_header
      _
    $region3: #{tpu_custom_call.1} parent=1 // loop_header
      %s34 = sphi 0, %s38
      %p35 = scmp.ge.s32.totalorder %s34, 6
      %s44 = sphi 0, %s46
      %s47 = sphi 0, %s44
      %s48 = sphi 0, %s47
      %s64 = sphi 0, %s48
      %s70 = sphi 0, %s72
      %s73 = sphi 0, %s70
      %s74 = sphi 0, %s73
      %s90 = sphi 0, %s74
      %s96 = sphi 0, %s98
      %s99 = sphi 0, %s96
      %s100 = sphi 0, %s99
      %s116 = sphi 0, %s100
      %s122 = sphi 0, %s124
      %s125 = sphi 0, %s122
      %s126 = sphi 0, %s125
      %s142 = sphi 0, %s126
      %s148 = sphi 0, %s150
      %s151 = sphi 0, %s148
      %s152 = sphi 0, %s151
      %s168 = sphi 0, %s152
      %s174 = sphi 0, %s176
      %s177 = sphi 0, %s174
      %s178 = sphi 0, %s177
      %s194 = sphi 0, %s178
      %s200 = sphi 0, %s202
      %s203 = sphi 0, %s200
      %s204 = sphi 0, %s203
      %s220 = sphi 0, %s204
      %s226 = sphi 0, %s228
      %s229 = sphi 0, %s226
      %s230 = sphi 0, %s229
      %s246 = sphi 0, %s230
      %s252 = sphi 0, %s254
      %s255 = sphi 0, %s252
      %s256 = sphi 0, %s255
      %s272 = sphi 0, %s256
      %s278 = sphi 0, %s280
      %s281 = sphi 0, %s278
      %s282 = sphi 0, %s281
      %s298 = sphi 0, %s282
    $region4: #{tpu_custom_call.1} parent=1 // loop_header_branch
      %37 = sbr.rel (%p35) target = $region8
    $region5: #{tpu_custom_call.1} parent=1 // loop_body
      %s39 = ssub.s32 %s34, 1
      %s40 = ssub.s32 %s34, 2
      %s41 = sadd.s32 %s34, 1
      %s42 = ssub.s32 %s34, %s41
      %p43 = scmp.eq.s32.totalorder %s42, 0
      %s45 = sadd.s32 %s44, 1
      %s46 = scalar_select %p43, %s44, %s45
      %p49 = pneg %p43
      %p50 = scmp.eq.s32.totalorder %s34, 3
      %p51 = por %p49, %p50
      %p52 = scmp.ne.s32.totalorder %s44, %s47
      %p53 = scmp.eq.s32.totalorder %s34, 0
      %p54 = por %p52, %p53
      %p55 = scmp.ne.s32.totalorder %s44, %s47
      %p56 = scmp.eq.s32.totalorder %s39, 3
      %p57 = por %p55, %p56
      %p58 = scmp.ne.s32.totalorder %s47, %s48
      %p59 = scmp.eq.s32.totalorder %s39, 0
      %p60 = por %p58, %p59
      %p61 = scmp.ne.s32.totalorder %s47, %s48
      %p62 = scmp.eq.s32.totalorder %s40, 3
      %p63 = por %p61, %p62
      %p65 = scmp.ne.s32.totalorder %s48, %s64
      %p66 = scmp.eq.s32.totalorder %s40, 0
      %p67 = por %p65, %p66
      %s68 = ssub.s32 %s34, %s41
      %p69 = scmp.eq.s32.totalorder %s68, 0
      %s71 = sadd.s32 %s70, 1
      %s72 = scalar_select %p69, %s70, %s71
      %p75 = pneg %p69
      %p76 = scmp.eq.s32.totalorder %s34, 3
      %p77 = por %p75, %p76
      %p78 = scmp.ne.s32.totalorder %s70, %s73
      %p79 = scmp.eq.s32.totalorder %s34, 0
      %p80 = por %p78, %p79
      %p81 = scmp.ne.s32.totalorder %s70, %s73
      %p82 = scmp.eq.s32.totalorder %s39, 3
      %p83 = por %p81, %p82
      %p84 = scmp.ne.s32.totalorder %s73, %s74
      %p85 = scmp.eq.s32.totalorder %s39, 0
      %p86 = por %p84, %p85
      %p87 = scmp.ne.s32.totalorder %s73, %s74
      %p88 = scmp.eq.s32.totalorder %s40, 3
      %p89 = por %p87, %p88
      %p91 = scmp.ne.s32.totalorder %s74, %s90
      %p92 = scmp.eq.s32.totalorder %s40, 0
      %p93 = por %p91, %p92
      %s94 = ssub.s32 %s34, %s41
      %p95 = scmp.eq.s32.totalorder %s94, 0
      %s97 = sadd.s32 %s96, 1
      %s98 = scalar_select %p95, %s96, %s97
      %p101 = pneg %p95
      %p102 = scmp.eq.s32.totalorder %s34, 3
      %p103 = por %p101, %p102
      %p104 = scmp.ne.s32.totalorder %s96, %s99
      %p105 = scmp.eq.s32.totalorder %s34, 0
      %p106 = por %p104, %p105
      %p107 = scmp.ne.s32.totalorder %s96, %s99
      %p108 = scmp.eq.s32.totalorder %s39, 3
      %p109 = por %p107, %p108
      %p110 = scmp.ne.s32.totalorder %s99, %s100
      %p111 = scmp.eq.s32.totalorder %s39, 0
      %p112 = por %p110, %p111
      %p113 = scmp.ne.s32.totalorder %s99, %s100
      %p114 = scmp.eq.s32.totalorder %s40, 3
      %p115 = por %p113, %p114
      %p117 = scmp.ne.s32.totalorder %s100, %s116
      %p118 = scmp.eq.s32.totalorder %s40, 0
      %p119 = por %p117, %p118
      %s120 = ssub.s32 %s34, %s41
      %p121 = scmp.eq.s32.totalorder %s120, 0
      %s123 = sadd.s32 %s122, 1
      %s124 = scalar_select %p121, %s122, %s123
      %p127 = pneg %p121
      %p128 = scmp.eq.s32.totalorder %s34, 3
      %p129 = por %p127, %p128
      %p130 = scmp.ne.s32.totalorder %s122, %s125
      %p131 = scmp.eq.s32.totalorder %s34, 0
      %p132 = por %p130, %p131
      %p133 = scmp.ne.s32.totalorder %s122, %s125
      %p134 = scmp.eq.s32.totalorder %s39, 3
      %p135 = por %p133, %p134
      %p136 = scmp.ne.s32.totalorder %s125, %s126
      %p137 = scmp.eq.s32.totalorder %s39, 0
      %p138 = por %p136, %p137
      %p139 = scmp.ne.s32.totalorder %s125, %s126
      %p140 = scmp.eq.s32.totalorder %s40, 3
      %p141 = por %p139, %p140
      %p143 = scmp.ne.s32.totalorder %s126, %s142
      %p144 = scmp.eq.s32.totalorder %s40, 0
      %p145 = por %p143, %p144
      %s146 = ssub.s32 %s34, %s41
      %p147 = scmp.eq.s32.totalorder %s146, 0
      %s149 = sadd.s32 %s148, 1
      %s150 = scalar_select %p147, %s148, %s149
      %p153 = pneg %p147
      %p154 = scmp.eq.s32.totalorder %s34, 3
      %p155 = por %p153, %p154
      %p156 = scmp.ne.s32.totalorder %s148, %s151
      %p157 = scmp.eq.s32.totalorder %s34, 0
      %p158 = por %p156, %p157
      %p159 = scmp.ne.s32.totalorder %s148, %s151
      %p160 = scmp.eq.s32.totalorder %s39, 3
      %p161 = por %p159, %p160
      %p162 = scmp.ne.s32.totalorder %s151, %s152
      %p163 = scmp.eq.s32.totalorder %s39, 0
      %p164 = por %p162, %p163
      %p165 = scmp.ne.s32.totalorder %s151, %s152
      %p166 = scmp.eq.s32.totalorder %s40, 3
      %p167 = por %p165, %p166
      %p169 = scmp.ne.s32.totalorder %s152, %s168
      %p170 = scmp.eq.s32.totalorder %s40, 0
      %p171 = por %p169, %p170
      %s172 = ssub.s32 %s34, %s41
      %p173 = scmp.eq.s32.totalorder %s172, 0
      %s175 = sadd.s32 %s174, 1
      %s176 = scalar_select %p173, %s174, %s175
      %p179 = pneg %p173
      %p180 = scmp.eq.s32.totalorder %s34, 3
      %p181 = por %p179, %p180
      %p182 = scmp.ne.s32.totalorder %s174, %s177
      %p183 = scmp.eq.s32.totalorder %s34, 0
      %p184 = por %p182, %p183
      %p185 = scmp.ne.s32.totalorder %s174, %s177
      %p186 = scmp.eq.s32.totalorder %s39, 3
      %p187 = por %p185, %p186
      %p188 = scmp.ne.s32.totalorder %s177, %s178
      %p189 = scmp.eq.s32.totalorder %s39, 0
      %p190 = por %p188, %p189
      %p191 = scmp.ne.s32.totalorder %s177, %s178
      %p192 = scmp.eq.s32.totalorder %s40, 3
      %p193 = por %p191, %p192
      %p195 = scmp.ne.s32.totalorder %s178, %s194
      %p196 = scmp.eq.s32.totalorder %s40, 0
      %p197 = por %p195, %p196
      %s198 = ssub.s32 %s34, %s41
      %p199 = scmp.eq.s32.totalorder %s198, 0
      %s201 = sadd.s32 %s200, 1
      %s202 = scalar_select %p199, %s200, %s201
      %p205 = pneg %p199
      %p206 = scmp.eq.s32.totalorder %s34, 3
      %p207 = por %p205, %p206
      %p208 = scmp.ne.s32.totalorder %s200, %s203
      %p209 = scmp.eq.s32.totalorder %s34, 0
      %p210 = por %p208, %p209
      %p211 = scmp.ne.s32.totalorder %s200, %s203
      %p212 = scmp.eq.s32.totalorder %s39, 3
      %p213 = por %p211, %p212
      %p214 = scmp.ne.s32.totalorder %s203, %s204
      %p215 = scmp.eq.s32.totalorder %s39, 0
      %p216 = por %p214, %p215
      %p217 = scmp.ne.s32.totalorder %s203, %s204
      %p218 = scmp.eq.s32.totalorder %s40, 3
      %p219 = por %p217, %p218
      %p221 = scmp.ne.s32.totalorder %s204, %s220
      %p222 = scmp.eq.s32.totalorder %s40, 0
      %p223 = por %p221, %p222
      %s224 = ssub.s32 %s34, %s41
      %p225 = scmp.eq.s32.totalorder %s224, 0
      %s227 = sadd.s32 %s226, 1
      %s228 = scalar_select %p225, %s226, %s227
      %p231 = pneg %p225
      %p232 = scmp.eq.s32.totalorder %s34, 3
      %p233 = por %p231, %p232
      %p234 = scmp.ne.s32.totalorder %s226, %s229
      %p235 = scmp.eq.s32.totalorder %s34, 0
      %p236 = por %p234, %p235
      %p237 = scmp.ne.s32.totalorder %s226, %s229
      %p238 = scmp.eq.s32.totalorder %s39, 3
      %p239 = por %p237, %p238
      %p240 = scmp.ne.s32.totalorder %s229, %s230
      %p241 = scmp.eq.s32.totalorder %s39, 0
      %p242 = por %p240, %p241
      %p243 = scmp.ne.s32.totalorder %s229, %s230
      %p244 = scmp.eq.s32.totalorder %s40, 3
      %p245 = por %p243, %p244
      %p247 = scmp.ne.s32.totalorder %s230, %s246
      %p248 = scmp.eq.s32.totalorder %s40, 0
      %p249 = por %p247, %p248
      %s250 = ssub.s32 %s34, %s41
      %p251 = scmp.eq.s32.totalorder %s250, 0
      %s253 = sadd.s32 %s252, 1
      %s254 = scalar_select %p251, %s252, %s253
      %p257 = pneg %p251
      %p258 = scmp.eq.s32.totalorder %s34, 3
      %p259 = por %p257, %p258
      %p260 = scmp.ne.s32.totalorder %s252, %s255
      %p261 = scmp.eq.s32.totalorder %s34, 0
      %p262 = por %p260, %p261
      %p263 = scmp.ne.s32.totalorder %s252, %s255
      %p264 = scmp.eq.s32.totalorder %s39, 3
      %p265 = por %p263, %p264
      %p266 = scmp.ne.s32.totalorder %s255, %s256
      %p267 = scmp.eq.s32.totalorder %s39, 0
      %p268 = por %p266, %p267
      %p269 = scmp.ne.s32.totalorder %s255, %s256
      %p270 = scmp.eq.s32.totalorder %s40, 3
      %p271 = por %p269, %p270
      %p273 = scmp.ne.s32.totalorder %s256, %s272
      %p274 = scmp.eq.s32.totalorder %s40, 0
      %p275 = por %p273, %p274
      %s276 = ssub.s32 %s34, %s41
      %p277 = scmp.eq.s32.totalorder %s276, 0
      %s279 = sadd.s32 %s278, 1
      %s280 = scalar_select %p277, %s278, %s279
      %p283 = pneg %p277
      %p284 = scmp.eq.s32.totalorder %s34, 3
      %p285 = por %p283, %p284
      %p286 = scmp.ne.s32.totalorder %s278, %s281
      %p287 = scmp.eq.s32.totalorder %s34, 0
      %p288 = por %p286, %p287
      %p289 = scmp.ne.s32.totalorder %s278, %s281
      %p290 = scmp.eq.s32.totalorder %s39, 3
      %p291 = por %p289, %p290
      %p292 = scmp.ne.s32.totalorder %s281, %s282
      %p293 = scmp.eq.s32.totalorder %s39, 0
      %p294 = por %p292, %p293
      %p295 = scmp.ne.s32.totalorder %s281, %s282
      %p296 = scmp.eq.s32.totalorder %s40, 3
      %p297 = por %p295, %p296
      %p299 = scmp.ne.s32.totalorder %s282, %s298
      %p300 = scmp.eq.s32.totalorder %s40, 0
      %p301 = por %p299, %p300
      %p302 = scmp.le.s32.totalorder 1, %s34
      %p303 = scmp.lt.s32.totalorder %s34, 5
      %p304 = pnand %p302, %p303
      %p305 = pneg %p304
      // Predicated region
      $region9: #{tpu_custom_call.1} parent=5 // pred_check
        _
      $region10: #{tpu_custom_call.1} parent=5 // pred_check_branch
        %307 = sbr.rel (%p304) target = $region12
      $region11: #{tpu_custom_call.1} parent=5 // pred_region
        %s308 = ssub.s32 %s34, 1
      $region12: #{tpu_custom_call.1} parent=5 // pred_fallthru
        _
      %p309 = scmp.lt.s32.totalorder %s34, 4
      // Predicated region
      $region13: #{tpu_custom_call.1} parent=5 // pred_check
        %p310 = pneg %p309
      $region14: #{tpu_custom_call.1} parent=5 // pred_check_branch
        %312 = sbr.rel (%p310) target = $region16
      $region15: #{tpu_custom_call.1} parent=5 // pred_region
        // Predicated region
        $region17: #{tpu_custom_call.1} parent=15 // pred_check
          %p313 = pneg %p54
        $region18: #{tpu_custom_call.1} parent=15 // pred_check_branch
          %315 = sbr.rel (%p313) target = $region20
        $region19: #{tpu_custom_call.1} parent=15 // pred_region
          %s316 = sand.u32 %s44, 1
          %s317 = scalar_lea.sflag [#allocation3], %s316
          %s318 = sand.u32 %s44, 1
          %s319 = smul.addr %s318, 8
          %s320 = scalar_lea.vmem [#allocation2], %s319
          %s322 = ssub.s32 128, 128
          %323 = vsyncadd %s317, %s322
          %s324 = smul.addr %s34, 128
          %s325 = scalar_lea.hbm %s0, %s324
          %s327 = sshll.u32 %s320, 4
          %s328 = int_to_ptr.vmem [resolvable:$true] %s327
          %330 = dma.hbm_to_vmem [thread:$0]  %s325, 128, %s328, %s317
        $region20: #{tpu_custom_call.1} parent=15 // pred_fallthru
          _
        // Predicated region
        $region21: #{tpu_custom_call.1} parent=15 // pred_check
          %p331 = pneg %p80
        $region22: #{tpu_custom_call.1} parent=15 // pred_check_branch
          %333 = sbr.rel (%p331) target = $region24
        $region23: #{tpu_custom_call.1} parent=15 // pred_region
          %s334 = sand.u32 %s34, 1
          %s335 = scalar_lea.sflag [#allocation6], %s334
          %s336 = sand.u32 %s70, 1
          %s337 = smul.addr %s336, 8
          %s338 = scalar_lea.vmem [#allocation5], %s337
          %s340 = ssub.s32 128, 128
          %341 = vsyncadd %s335, %s340
          %s342 = smul.addr %s34, 128
          %s343 = scalar_lea.hbm %s1, %s342
          %s345 = sshll.u32 %s338, 4
          %s346 = int_to_ptr.vmem [resolvable:$true] %s345
          %348 = dma.hbm_to_vmem [thread:$0]  %s343, 128, %s346, %s335
        $region24: #{tpu_custom_call.1} parent=15 // pred_fallthru
          _
        // Predicated region
        $region25: #{tpu_custom_call.1} parent=15 // pred_check
          %p349 = pneg %p106
        $region26: #{tpu_custom_call.1} parent=15 // pred_check_branch
          %351 = sbr.rel (%p349) target = $region28
        $region27: #{tpu_custom_call.1} parent=15 // pred_region
          %s352 = sand.u32 %s34, 1
          %s353 = scalar_lea.sflag [#allocation6], %s352
          %s354 = sand.u32 %s96, 1
          %s355 = smul.addr %s354, 8
          %s356 = scalar_lea.vmem [#allocation7], %s355
          %s358 = ssub.s32 128, 128
          %359 = vsyncadd %s353, %s358
          %s360 = smul.addr %s34, 128
          %s361 = scalar_lea.hbm %s2, %s360
          %s363 = sshll.u32 %s356, 4
          %s364 = int_to_ptr.vmem [resolvable:$true] %s363
          %366 = dma.hbm_to_vmem [thread:$0]  %s361, 128, %s364, %s353
        $region28: #{tpu_custom_call.1} parent=15 // pred_fallthru
          _
        // Predicated region
        $region29: #{tpu_custom_call.1} parent=15 // pred_check
          %p367 = pneg %p132
        $region30: #{tpu_custom_call.1} parent=15 // pred_check_branch
          %369 = sbr.rel (%p367) target = $region32
        $region31: #{tpu_custom_call.1} parent=15 // pred_region
          %s370 = sand.u32 %s34, 1
          %s371 = scalar_lea.sflag [#allocation9], %s370
          %s372 = sand.u32 %s122, 1
          %s373 = smul.addr %s372, 8
          %s374 = scalar_lea.vmem [#allocation8], %s373
          %s376 = ssub.s32 128, 128
          %377 = vsyncadd %s371, %s376
          %s378 = smul.addr %s34, 128
          %s379 = scalar_lea.hbm %s3, %s378
          %s381 = sshll.u32 %s374, 4
          %s382 = int_to_ptr.vmem [resolvable:$true] %s381
          %384 = dma.hbm_to_vmem [thread:$0]  %s379, 128, %s382, %s371
        $region32: #{tpu_custom_call.1} parent=15 // pred_fallthru
          _
        // Predicated region
        $region33: #{tpu_custom_call.1} parent=15 // pred_check
          %p385 = pneg %p158
        $region34: #{tpu_custom_call.1} parent=15 // pred_check_branch
          %387 = sbr.rel (%p385) target = $region36
        $region35: #{tpu_custom_call.1} parent=15 // pred_region
          %s388 = sand.u32 %s34, 1
          %s389 = scalar_lea.sflag [#allocation9], %s388
          %s390 = sand.u32 %s148, 1
          %s391 = smul.addr %s390, 8
          %s392 = scalar_lea.vmem [#allocation10], %s391
          %s394 = ssub.s32 128, 128
          %395 = vsyncadd %s389, %s394
          %s396 = smul.addr %s34, 128
          %s397 = scalar_lea.hbm %s4, %s396
          %s399 = sshll.u32 %s392, 4
          %s400 = int_to_ptr.vmem [resolvable:$true] %s399
          %402 = dma.hbm_to_vmem [thread:$0]  %s397, 128, %s400, %s389
        $region36: #{tpu_custom_call.1} parent=15 // pred_fallthru
          _
        // Predicated region
        $region37: #{tpu_custom_call.1} parent=15 // pred_check
          %p403 = pneg %p184
        $region38: #{tpu_custom_call.1} parent=15 // pred_check_branch
          %405 = sbr.rel (%p403) target = $region40
        $region39: #{tpu_custom_call.1} parent=15 // pred_region
          %s406 = sand.u32 %s34, 1
          %s407 = scalar_lea.sflag [#allocation12], %s406
          %s408 = sand.u32 %s174, 1
          %s409 = smul.addr %s408, 8
          %s410 = scalar_lea.vmem [#allocation11], %s409
          %s412 = ssub.s32 128, 128
          %413 = vsyncadd %s407, %s412
          %s414 = smul.addr %s34, 128
          %s415 = scalar_lea.hbm %s5, %s414
          %s417 = sshll.u32 %s410, 4
          %s418 = int_to_ptr.vmem [resolvable:$true] %s417
          %420 = dma.hbm_to_vmem [thread:$0]  %s415, 128, %s418, %s407
        $region40: #{tpu_custom_call.1} parent=15 // pred_fallthru
          _
        // Predicated region
        $region41: #{tpu_custom_call.1} parent=15 // pred_check
          %p421 = pneg %p210
        $region42: #{tpu_custom_call.1} parent=15 // pred_check_branch
          %423 = sbr.rel (%p421) target = $region44
        $region43: #{tpu_custom_call.1} parent=15 // pred_region
          %s424 = sand.u32 %s34, 1
          %s425 = scalar_lea.sflag [#allocation12], %s424
          %s426 = sand.u32 %s200, 1
          %s427 = smul.addr %s426, 8
          %s428 = scalar_lea.vmem [#allocation13], %s427
          %s430 = ssub.s32 128, 128
          %431 = vsyncadd %s425, %s430
          %s432 = smul.addr %s34, 128
          %s433 = scalar_lea.hbm %s6, %s432
          %s435 = sshll.u32 %s428, 4
          %s436 = int_to_ptr.vmem [resolvable:$true] %s435
          %438 = dma.hbm_to_vmem [thread:$0]  %s433, 128, %s436, %s425
        $region44: #{tpu_custom_call.1} parent=15 // pred_fallthru
          _
      $region16: #{tpu_custom_call.1} parent=5 // pred_fallthru
        _
      %p439 = scmp.le.s32.totalorder 1, %s34
      %p440 = scmp.lt.s32.totalorder %s34, 5
      %p441 = pnand %p439, %p440
      %p442 = pneg %p441
      // Predicated region
      $region45: #{tpu_custom_call.1} parent=5 // pred_check
        _
      $region46: #{tpu_custom_call.1} parent=5 // pred_check_branch
        %444 = sbr.rel (%p441) target = $region48
      $region47: #{tpu_custom_call.1} parent=5 // pred_region
        %s445 = ssub.s32 %s34, 1
        %s446 = sand.u32 %s47, 1
        %s447 = scalar_lea.sflag [#allocation3], %s446
        %s448 = sand.u32 %s47, 1
        %s449 = smul.addr %s448, 8
        %s450 = scalar_lea.vmem [#allocation2], %s449
        // Predicated region
        $region49: #{tpu_custom_call.1} parent=47 // pred_check
          %p451 = pneg %p60
        $region50: #{tpu_custom_call.1} parent=47 // pred_check_branch
          %453 = sbr.rel (%p451) target = $region52
        $region51: #{tpu_custom_call.1} parent=47 // pred_region
          %454 = dma.done %s447, 128
        $region52: #{tpu_custom_call.1} parent=47 // pred_fallthru
          _
        %s455 = sand.u32 %s39, 1
        %s456 = scalar_lea.sflag [#allocation6], %s455
        %s457 = sand.u32 %s73, 1
        %s458 = smul.addr %s457, 8
        %s459 = scalar_lea.vmem [#allocation5], %s458
        // Predicated region
        $region53: #{tpu_custom_call.1} parent=47 // pred_check
          %p460 = pneg %p86
        $region54: #{tpu_custom_call.1} parent=47 // pred_check_branch
          %462 = sbr.rel (%p460) target = $region56
        $region55: #{tpu_custom_call.1} parent=47 // pred_region
          %463 = dma.done %s456, 128
        $region56: #{tpu_custom_call.1} parent=47 // pred_fallthru
          _
        %s464 = sand.u32 %s39, 1
        %s465 = scalar_lea.sflag [#allocation6], %s464
        %s466 = sand.u32 %s99, 1
        %s467 = smul.addr %s466, 8
        %s468 = scalar_lea.vmem [#allocation7], %s467
        // Predicated region
        $region57: #{tpu_custom_call.1} parent=47 // pred_check
          %p469 = pneg %p112
        $region58: #{tpu_custom_call.1} parent=47 // pred_check_branch
          %471 = sbr.rel (%p469) target = $region60
        $region59: #{tpu_custom_call.1} parent=47 // pred_region
          %472 = dma.done %s465, 128
        $region60: #{tpu_custom_call.1} parent=47 // pred_fallthru
          _
        %s473 = sand.u32 %s39, 1
        %s474 = scalar_lea.sflag [#allocation9], %s473
        %s475 = sand.u32 %s125, 1
        %s476 = smul.addr %s475, 8
        %s477 = scalar_lea.vmem [#allocation8], %s476
        // Predicated region
        $region61: #{tpu_custom_call.1} parent=47 // pred_check
          %p478 = pneg %p138
        $region62: #{tpu_custom_call.1} parent=47 // pred_check_branch
          %480 = sbr.rel (%p478) target = $region64
        $region63: #{tpu_custom_call.1} parent=47 // pred_region
          %481 = dma.done %s474, 128
        $region64: #{tpu_custom_call.1} parent=47 // pred_fallthru
          _
        %s482 = sand.u32 %s39, 1
        %s483 = scalar_lea.sflag [#allocation9], %s482
        %s484 = sand.u32 %s151, 1
        %s485 = smul.addr %s484, 8
        %s486 = scalar_lea.vmem [#allocation10], %s485
        // Predicated region
        $region65: #{tpu_custom_call.1} parent=47 // pred_check
          %p487 = pneg %p164
        $region66: #{tpu_custom_call.1} parent=47 // pred_check_branch
          %489 = sbr.rel (%p487) target = $region68
        $region67: #{tpu_custom_call.1} parent=47 // pred_region
          %490 = dma.done %s483, 128
        $region68: #{tpu_custom_call.1} parent=47 // pred_fallthru
          _
        %s491 = sand.u32 %s39, 1
        %s492 = scalar_lea.sflag [#allocation12], %s491
        %s493 = sand.u32 %s177, 1
        %s494 = smul.addr %s493, 8
        %s495 = scalar_lea.vmem [#allocation11], %s494
        // Predicated region
        $region69: #{tpu_custom_call.1} parent=47 // pred_check
          %p496 = pneg %p190
        $region70: #{tpu_custom_call.1} parent=47 // pred_check_branch
          %498 = sbr.rel (%p496) target = $region72
        $region71: #{tpu_custom_call.1} parent=47 // pred_region
          %499 = dma.done %s492, 128
        $region72: #{tpu_custom_call.1} parent=47 // pred_fallthru
          _
        %s500 = sand.u32 %s39, 1
        %s501 = scalar_lea.sflag [#allocation12], %s500
        %s502 = sand.u32 %s203, 1
        %s503 = smul.addr %s502, 8
        %s504 = scalar_lea.vmem [#allocation13], %s503
        // Predicated region
        $region73: #{tpu_custom_call.1} parent=47 // pred_check
          %p505 = pneg %p216
        $region74: #{tpu_custom_call.1} parent=47 // pred_check_branch
          %507 = sbr.rel (%p505) target = $region76
        $region75: #{tpu_custom_call.1} parent=47 // pred_region
          %508 = dma.done %s501, 128
        $region76: #{tpu_custom_call.1} parent=47 // pred_fallthru
          _
        %s509 = sand.u32 %s47, 1
        %s510 = scalar_lea.sflag [#allocation3], %s509
        %s511 = sand.u32 %s47, 1
        %s512 = smul.addr %s511, 8
        %s513 = scalar_lea.vmem [#allocation2], %s512
        %p514 = pneg %p60
        %p515 = pneg %p57
        %s516 = sand.u32 %s39, 1
        %s517 = scalar_lea.sflag [#allocation6], %s516
        %s518 = sand.u32 %s73, 1
        %s519 = smul.addr %s518, 8
        %s520 = scalar_lea.vmem [#allocation5], %s519
        %p521 = pneg %p86
        %p522 = pneg %p83
        %s523 = sand.u32 %s39, 1
        %s524 = scalar_lea.sflag [#allocation6], %s523
        %s525 = sand.u32 %s99, 1
        %s526 = smul.addr %s525, 8
        %s527 = scalar_lea.vmem [#allocation7], %s526
        %p528 = pneg %p112
        %p529 = pneg %p109
        %s530 = sand.u32 %s39, 1
        %s531 = scalar_lea.sflag [#allocation9], %s530
        %s532 = sand.u32 %s125, 1
        %s533 = smul.addr %s532, 8
        %s534 = scalar_lea.vmem [#allocation8], %s533
        %p535 = pneg %p138
        %p536 = pneg %p135
        %s537 = sand.u32 %s39, 1
        %s538 = scalar_lea.sflag [#allocation9], %s537
        %s539 = sand.u32 %s151, 1
        %s540 = smul.addr %s539, 8
        %s541 = scalar_lea.vmem [#allocation10], %s540
        %p542 = pneg %p164
        %p543 = pneg %p161
        %s544 = sand.u32 %s39, 1
        %s545 = scalar_lea.sflag [#allocation12], %s544
        %s546 = sand.u32 %s177, 1
        %s547 = smul.addr %s546, 8
        %s548 = scalar_lea.vmem [#allocation11], %s547
        %p549 = pneg %p190
        %p550 = pneg %p187
        %s551 = sand.u32 %s39, 1
        %s552 = scalar_lea.sflag [#allocation12], %s551
        %s553 = sand.u32 %s203, 1
        %s554 = smul.addr %s553, 8
        %s555 = scalar_lea.vmem [#allocation13], %s554
        %p556 = pneg %p216
        %p557 = pneg %p213
        %p558 = pneg %p242
        %p559 = pneg %p239
        %s560 = sand.u32 %s229, 1
        %s561 = scalar_lea.sflag [#allocation4], %s560
        %s562 = sand.u32 %s229, 1
        %s563 = smul.addr %s562, 8
        %s564 = scalar_lea.vmem [#allocation14], %s563
        %p565 = pneg %p268
        %p566 = pneg %p265
        %s567 = sand.u32 %s39, 1
        %s568 = scalar_lea.sflag [#allocation16], %s567
        %s569 = sand.u32 %s255, 1
        %s570 = smul.addr %s569, 8
        %s571 = scalar_lea.vmem [#allocation15], %s570
        %p572 = pneg %p294
        %p573 = pneg %p291
        %s574 = sand.u32 %s39, 1
        %s575 = scalar_lea.sflag [#allocation16], %s574
        %s576 = sand.u32 %s281, 1
        %s577 = smul.addr %s576, 8
        %s578 = scalar_lea.vmem [#allocation17], %s577
        %v579 = vld [vmem:[%s477] sm:$0xff]
        %v580 = vld [vmem:[%s450] sm:$0xff]
        %v581 = vmul.f32 %v579, %v580
        %v582 = vld [vmem:[%s486] sm:$0xff]
        %v583 = vadd.f32 %v581, %v582
        %v584 = vld [vmem:[%s459] sm:$0xff]
        %v585 = vmul.f32 %v579, %v584
        %v586 = vld [vmem:[%s495] sm:$0xff]
        %v587 = vadd.f32 %v585, %v586
        %v588 = vld [vmem:[%s468] sm:$0xff]
        %v589 = vmul.f32 %v579, %v588
        %v590 = vld [vmem:[%s504] sm:$0xff]
        %v591 = vadd.f32 %v589, %v590
        %v592 = vmul.f32 %v583, %v583
        %v593 = vmul.f32 %v587, %v587
        %v594 = vrcp.pop %v591
        %v595 = vmul.f32 1.0, %v594
        %v596 = vmul.f32 %v593, 2.0
        %v597 = vsub.f32 %v592, %v596
        %v598 = vmul.f32 %v597, %v595
        %599 = vst [vmem:[%s564] sm:$0xff] %v598
        %v600 = vmul.f32 %v593, %v595
        %601 = vst [vmem:[%s571] sm:$0xff] %v600
        %602 = vst [vmem:[%s578] sm:$0xff] %v591
        %s603 = sand.u32 %s229, 1
        %s604 = scalar_lea.sflag [#allocation4], %s603
        %s605 = sand.u32 %s229, 1
        %s606 = smul.addr %s605, 8
        %s607 = scalar_lea.vmem [#allocation14], %s606
        %s608 = sand.u32 %s39, 1
        %s609 = scalar_lea.sflag [#allocation16], %s608
        %s610 = sand.u32 %s255, 1
        %s611 = smul.addr %s610, 8
        %s612 = scalar_lea.vmem [#allocation15], %s611
        %s613 = sand.u32 %s39, 1
        %s614 = scalar_lea.sflag [#allocation16], %s613
        %s615 = sand.u32 %s281, 1
        %s616 = smul.addr %s615, 8
        %s617 = scalar_lea.vmem [#allocation17], %s616
        // Predicated region
        $region77: #{tpu_custom_call.1} parent=47 // pred_check
          %p618 = pneg %p239
        $region78: #{tpu_custom_call.1} parent=47 // pred_check_branch
          %620 = sbr.rel (%p618) target = $region80
        $region79: #{tpu_custom_call.1} parent=47 // pred_region
          %s622 = ssub.s32 128, 128
          %623 = vsyncadd %s604, %s622
          %s624 = smul.addr %s39, 128
          %s625 = scalar_lea.hbm %s7, %s624
          %s627 = sshll.u32 %s607, 4
          %s628 = int_to_ptr.vmem [resolvable:$true] %s627
          %630 = dma.vmem_to_hbm [thread:$0]  %s628, 128, %s625, %s604
        $region80: #{tpu_custom_call.1} parent=47 // pred_fallthru
          _
        // Predicated region
        $region81: #{tpu_custom_call.1} parent=47 // pred_check
          %p631 = pneg %p265
        $region82: #{tpu_custom_call.1} parent=47 // pred_check_branch
          %633 = sbr.rel (%p631) target = $region84
        $region83: #{tpu_custom_call.1} parent=47 // pred_region
          %s635 = ssub.s32 128, 128
          %636 = vsyncadd %s609, %s635
          %s637 = smul.addr %s39, 128
          %s638 = scalar_lea.hbm %s8, %s637
          %s640 = sshll.u32 %s612, 4
          %s641 = int_to_ptr.vmem [resolvable:$true] %s640
          %643 = dma.vmem_to_hbm [thread:$0]  %s641, 128, %s638, %s609
        $region84: #{tpu_custom_call.1} parent=47 // pred_fallthru
          _
        // Predicated region
        $region85: #{tpu_custom_call.1} parent=47 // pred_check
          %p644 = pneg %p291
        $region86: #{tpu_custom_call.1} parent=47 // pred_check_branch
          %646 = sbr.rel (%p644) target = $region88
        $region87: #{tpu_custom_call.1} parent=47 // pred_region
          %s648 = ssub.s32 128, 128
          %649 = vsyncadd %s614, %s648
          %s650 = smul.addr %s39, 128
          %s651 = scalar_lea.hbm %s9, %s650
          %s653 = sshll.u32 %s617, 4
          %s654 = int_to_ptr.vmem [resolvable:$true] %s653
          %656 = dma.vmem_to_hbm [thread:$0]  %s654, 128, %s651, %s614
        $region88: #{tpu_custom_call.1} parent=47 // pred_fallthru
          _
      $region48: #{tpu_custom_call.1} parent=5 // pred_fallthru
        _
      %p657 = scmp.le.s32.totalorder 2, %s34
      // Predicated region
      $region89: #{tpu_custom_call.1} parent=5 // pred_check
        %p658 = pneg %p657
      $region90: #{tpu_custom_call.1} parent=5 // pred_check_branch
        %660 = sbr.rel (%p658) target = $region92
      $region91: #{tpu_custom_call.1} parent=5 // pred_region
        %s661 = ssub.s32 %s34, 2
        // Predicated region
        $region93: #{tpu_custom_call.1} parent=91 // pred_check
          %p662 = pneg %p245
        $region94: #{tpu_custom_call.1} parent=91 // pred_check_branch
          %664 = sbr.rel (%p662) target = $region96
        $region95: #{tpu_custom_call.1} parent=91 // pred_region
          %s665 = sand.u32 %s230, 1
          %s666 = scalar_lea.sflag [#allocation4], %s665
          %s667 = sand.u32 %s230, 1
          %s668 = smul.addr %s667, 8
          %s669 = scalar_lea.vmem [#allocation14], %s668
          %670 = dma.done %s666, 128
        $region96: #{tpu_custom_call.1} parent=91 // pred_fallthru
          _
        // Predicated region
        $region97: #{tpu_custom_call.1} parent=91 // pred_check
          %p671 = pneg %p271
        $region98: #{tpu_custom_call.1} parent=91 // pred_check_branch
          %673 = sbr.rel (%p671) target = $region100
        $region99: #{tpu_custom_call.1} parent=91 // pred_region
          %s674 = sand.u32 %s40, 1
          %s675 = scalar_lea.sflag [#allocation16], %s674
          %s676 = sand.u32 %s256, 1
          %s677 = smul.addr %s676, 8
          %s678 = scalar_lea.vmem [#allocation15], %s677
          %679 = dma.done %s675, 128
        $region100: #{tpu_custom_call.1} parent=91 // pred_fallthru
          _
        // Predicated region
        $region101: #{tpu_custom_call.1} parent=91 // pred_check
          %p680 = pneg %p297
        $region102: #{tpu_custom_call.1} parent=91 // pred_check_branch
          %682 = sbr.rel (%p680) target = $region104
        $region103: #{tpu_custom_call.1} parent=91 // pred_region
          %s683 = sand.u32 %s40, 1
          %s684 = scalar_lea.sflag [#allocation16], %s683
          %s685 = sand.u32 %s282, 1
          %s686 = smul.addr %s685, 8
          %s687 = scalar_lea.vmem [#allocation17], %s686
          %688 = dma.done %s684, 128
        $region104: #{tpu_custom_call.1} parent=91 // pred_fallthru
          _
      $region92: #{tpu_custom_call.1} parent=5 // pred_fallthru
        _
    $region6: #{tpu_custom_call.1} parent=1 // loop_footer
      %s38 = sadd.s32 1, %s34
    $region7: #{tpu_custom_call.1} parent=1 // loop_footer_branch
      %33 = sbr.rel target = $region3
    $region8: #{tpu_custom_call.1} parent=1 // loop_exit
      _
    %689 = vsyncpa [#allocation3], 1
    %s690 = scalar_lea.sflag [#allocation3], 1
    %691 = vsyncpa %s690, 1
    %692 = vsyncpa [#allocation6], 1
    %s693 = scalar_lea.sflag [#allocation6], 1
    %694 = vsyncpa %s693, 1
    %695 = vsyncpa [#allocation9], 1
    %s696 = scalar_lea.sflag [#allocation9], 1
    %697 = vsyncpa %s696, 1
    %698 = vsyncpa [#allocation12], 1
    %s699 = scalar_lea.sflag [#allocation12], 1
    %700 = vsyncpa %s699, 1
    %701 = vsyncpa [#allocation4], 1
    %s702 = scalar_lea.sflag [#allocation4], 1
    %703 = vsyncpa %s702, 1
    %704 = vsyncpa [#allocation16], 1
    %s705 = scalar_lea.sflag [#allocation16], 1
    %706 = vsyncpa %s705, 1

</llo_original>
